<compile_context>
chip_gen: v7x
topology: tpu7x:2x2x1
jax: 0.10.0
libtpu: 0.0.40
codegen_flags: <defaults>
</compile_context>

<pallas_src>
import functools

import jax
import jax.numpy as jnp
from jax.experimental import pallas as pl
from jax.experimental.pallas import tpu as pltpu


# ----------------------------------------------------------------------------
# RTN weight quantization (parameter setup, plain JAX).
# Mirrors torch.ao.quantization.utils.determine_qparams with
# qscheme=per_channel_symmetric, dtype=int8, eps=1e-5, followed by
# quantize_per_channel on axis 0.
# ----------------------------------------------------------------------------
def weight_quantization_rtn(w_fp, n_bits=8):
    int_min = -(2 ** (n_bits - 1))          # -128
    int_max = 2 ** (n_bits - 1) - 1         # 127
    min_val = jnp.min(w_fp, axis=1)
    max_val = jnp.max(w_fp, axis=1)
    min_val_neg = jnp.minimum(min_val, 0.0)
    max_val_pos = jnp.maximum(max_val, 0.0)
    max_abs = jnp.maximum(-min_val_neg, max_val_pos)
    scale = max_abs / ((int_max - int_min) / 2.0)     # / 127.5
    scale = jnp.maximum(scale, 1e-5)
    zero_point = jnp.zeros_like(scale, dtype=jnp.int32)
    w_int = jnp.clip(jnp.round(w_fp / scale[:, None]), int_min, int_max).astype(jnp.int8)
    return w_int, scale.astype(jnp.float32), zero_point


# ----------------------------------------------------------------------------
# Pallas kernel: int8-weight quantized matmul with per-output-channel scaling.
#   x_ref: [tm, tk] bf16, w_ref: [tk, tn] int8, s_ref: [1, tn] f32,
#   o_ref: [tm, tn] f32, acc_ref: [tm, tn] f32 scratch.
# ----------------------------------------------------------------------------
def qmatmul_kernel(x_ref, w_ref, s_ref, o_ref, acc_ref):
    k = pl.program_id(2)

    @pl.when(k == 0)
    def _():
        acc_ref[...] = jnp.zeros_like(acc_ref)

    x = x_ref[...]                                    # [tm, tk] bf16
    w = w_ref[...].astype(jnp.bfloat16)               # int8 -> bf16 (exact)
    acc_ref[...] += jnp.dot(x, w, preferred_element_type=jnp.float32)

    @pl.when(k == pl.num_programs(2) - 1)
    def _():
        # Per-output-channel scale applied exactly once, in the epilogue.
        o_ref[...] = acc_ref[...] * s_ref[...]


def _round_up(x, m):
    return (x + m - 1) // m * m


@functools.partial(jax.jit, static_argnames=("tm", "tn", "tk"))
def _quantized_matmul_2d(x, w_t, scale, *, tm=256, tn=256, tk=512):
    """x: [M, K] f32, w_t: [K, N] int8 (already transposed), scale: [N] f32."""
    M, K = x.shape
    K2, N = w_t.shape
    assert K == K2

    # Sublane/lane-dense padding (M -> 16 for bf16 sublane packing, K/N -> 128).
    M_pad = _round_up(M, 16)
    N_pad = _round_up(N, 128)
    K_pad = _round_up(K, 128)

    # Shrink tiles to the (padded) problem, then re-pad to tile multiples.
    tm = min(tm, M_pad)
    tn = min(tn, N_pad)
    tk = min(tk, K_pad)
    M_pad = _round_up(M_pad, tm)
    N_pad = _round_up(N_pad, tn)
    K_pad = _round_up(K_pad, tk)

    x_bf16 = x.astype(jnp.bfloat16)
    if (M_pad, K_pad) == (M, K):
        x_p = x_bf16
    else:
        x_p = jnp.zeros((M_pad, K_pad), jnp.bfloat16).at[:M, :K].set(x_bf16)
    if (K_pad, N_pad) == (K, N):
        w_p = w_t
    else:
        w_p = jnp.zeros((K_pad, N_pad), jnp.int8).at[:K, :N].set(w_t)
    s_p = jnp.zeros((1, N_pad), jnp.float32).at[0, :N].set(scale.astype(jnp.float32))

    grid = (M_pad // tm, N_pad // tn, K_pad // tk)

    cost = pl.CostEstimate(
        flops=2 * M_pad * N_pad * K_pad,
        transcendentals=0,
        bytes_accessed=(M_pad * K_pad * 2            # bf16 activations
                        + K_pad * N_pad * 1          # int8 weights
                        + N_pad * 4                  # f32 scales
                        + M_pad * N_pad * 4),        # f32 output
    )

    out = pl.pallas_call(
        qmatmul_kernel,
        out_shape=jax.ShapeDtypeStruct((M_pad, N_pad), jnp.float32),
        grid_spec=pltpu.PrefetchScalarGridSpec(
            num_scalar_prefetch=0,
            grid=grid,
            in_specs=[
                pl.BlockSpec((tm, tk), lambda i, j, k: (i, k)),
                pl.BlockSpec((tk, tn), lambda i, j, k: (k, j)),
                pl.BlockSpec((1, tn), lambda i, j, k: (0, j)),
            ],
            out_specs=pl.BlockSpec((tm, tn), lambda i, j, k: (i, j)),
            scratch_shapes=[pltpu.VMEM((tm, tn), jnp.float32)],
        ),
        compiler_params=pltpu.CompilerParams(
            dimension_semantics=("parallel", "parallel", "arbitrary"),
            vmem_limit_bytes=64 * 1024 * 1024,
        ),
        cost_estimate=cost,
    )(x_p, w_p, s_p)

    if (M_pad, N_pad) == (M, N):
        return out
    return out[:M, :N]


def quantized_linear(x, w_int, scale, *, tm=256, tn=256, tk=512):
    """nn.Linear(bias=False) with int8 RTN weights.

    x: [..., K] f32, w_int: [N, K] int8 (torch Linear layout), scale: [N] f32.
    Returns [..., N] f32.
    """
    orig_shape = x.shape
    K = orig_shape[-1]
    x2d = x.reshape(-1, K)
    w_t = w_int.T                                    # one-time [K, N] transpose
    out2d = _quantized_matmul_2d(x2d, w_t, scale, tm=tm, tn=tn, tk=tk)
    return out2d.reshape(orig_shape[:-1] + (w_int.shape[0],))


if __name__ == "__main__":
    # Small shapes consistent with the module's forward: batch=8, hidden 32 -> 16.
    batch, input_dim, output_dim = 8, 32, 16

    key = jax.random.PRNGKey(0)
    kx, kw = jax.random.split(key)
    x = jax.random.normal(kx, (batch, input_dim), dtype=jnp.float32)
    # "Linear" weight in torch layout: [out_features, in_features].
    w_fp = jax.random.normal(kw, (output_dim, input_dim), dtype=jnp.float32) * 0.1

    # Quantize weights (RTN, per-channel symmetric, int8) — module setup step.
    w_int, scale, _zp = weight_quantization_rtn(w_fp, n_bits=8)

    # Run the Pallas quantized matmul (forward pass).
    out = quantized_linear(x, w_int, scale)
    out = jax.block_until_ready(out)

    # Reference: dequantized matmul in plain f32 JAX.
    ref = x @ (w_int.astype(jnp.float32) * scale[:, None]).T
    assert out.shape == ref.shape, "shape mismatch vs reference"
    # bf16 activation cast inside the kernel drops a few mantissa bits -> looser tol.
    assert jnp.allclose(out, ref, atol=2e-2, rtol=2e-2), "mismatch vs reference"

    print("KERNEL_OK")
</pallas_src>

<mosaic_0001>
module attributes {stable_mosaic.version = 11 : i64} {
  func.func @qmatmul_kernel(%arg0: i32, %arg1: i32, %arg2: i32, %arg3: memref<16x128xbf16, #tpu.memory_space<vmem>>, %arg4: memref<128x128xi8, #tpu.memory_space<vmem>>, %arg5: memref<1x128xf32, #tpu.memory_space<vmem>>, %arg6: memref<16x128xf32, #tpu.memory_space<vmem>>, %arg7: memref<16x128xf32, #tpu.memory_space<vmem>>) attributes {dimension_semantics = [#tpu.dimension_semantics<parallel>, #tpu.dimension_semantics<parallel>, #tpu.dimension_semantics<arbitrary>], iteration_bounds = array<i64: 1, 1, 1>, scalar_prefetch = 0 : i64, scratch_operands = 1 : i64, tpu.core_type = #tpu.core_type<tc>, window_params = [{transform_indices = @transform_0, window_bounds = array<i64: 16, 128>}, {transform_indices = @transform_1, window_bounds = array<i64: 128, 128>}, {transform_indices = @transform_2, window_bounds = array<i64: 1, 128>}, {transform_indices = @transform_3, window_bounds = array<i64: 16, 128>}]} {
    %c0_i32 = arith.constant 0 : i32
    %0 = arith.cmpi eq, %arg2, %c0_i32 : i32
    %1 = arith.extui %0 : i1 to i32
    %c0_i32_0 = arith.constant 0 : i32
    %2 = arith.cmpi ne, %1, %c0_i32_0 : i32
    scf.if %2 {
      %cst_10 = arith.constant 0.000000e+00 : f32
      %13 = vector.broadcast %cst_10 : f32 to vector<16x128xf32>
      %c0_11 = arith.constant 0 : index
      %c0_12 = arith.constant 0 : index
      %14 = vector.load %arg7[%c0_11, %c0_12] : memref<16x128xf32, #tpu.memory_space<vmem>>, vector<16x128xf32>
      tpu.vector_store %arg7[%c0_11, %c0_12], %13 {strides = array<i32>} : memref<16x128xf32, #tpu.memory_space<vmem>>, vector<16x128xf32>,
    } else {
    }
    %c0 = arith.constant 0 : index
    %c0_1 = arith.constant 0 : index
    %3 = vector.load %arg3[%c0, %c0_1] : memref<16x128xbf16, #tpu.memory_space<vmem>>, vector<16x128xbf16>
    %c0_2 = arith.constant 0 : index
    %c0_3 = arith.constant 0 : index
    %4 = vector.load %arg4[%c0_2, %c0_3] : memref<128x128xi8, #tpu.memory_space<vmem>>, vector<128x128xi8>
    %5 = arith.sitofp %4 : vector<128x128xi8> to vector<128x128xbf16>
    %c0_4 = arith.constant 0 : index
    %c0_5 = arith.constant 0 : index
    %6 = vector.load %arg7[%c0_4, %c0_5] : memref<16x128xf32, #tpu.memory_space<vmem>>, vector<16x128xf32>
    %cst = arith.constant dense<0.000000e+00> : vector<16x128xf32>
    %7 = tpu.matmul %3, %5, %cst {dimension_numbers = #tpu.dot_dimension_numbers<[1], [0], [0], [1], [0, 0, 1, 1], [], []>} : vector<16x128xbf16>, vector<128x128xbf16>, vector<16x128xf32> -> vector<16x128xf32>
    %8 = arith.addf %6, %7 : vector<16x128xf32>
    %c0_6 = arith.constant 0 : index
    %c0_7 = arith.constant 0 : index
    %9 = vector.load %arg7[%c0_6, %c0_7] : memref<16x128xf32, #tpu.memory_space<vmem>>, vector<16x128xf32>
    tpu.vector_store %arg7[%c0_6, %c0_7], %8 {strides = array<i32>} : memref<16x128xf32, #tpu.memory_space<vmem>>, vector<16x128xf32>,
    %c0_i32_8 = arith.constant 0 : i32
    %10 = arith.cmpi eq, %arg2, %c0_i32_8 : i32
    %11 = arith.extui %10 : i1 to i32
    %c0_i32_9 = arith.constant 0 : i32
    %12 = arith.cmpi ne, %11, %c0_i32_9 : i32
    scf.if %12 {
      %c0_10 = arith.constant 0 : index
      %c0_11 = arith.constant 0 : index
      %13 = vector.load %arg7[%c0_10, %c0_11] : memref<16x128xf32, #tpu.memory_space<vmem>>, vector<16x128xf32>
      %c0_12 = arith.constant 0 : index
      %c0_13 = arith.constant 0 : index
      %14 = vector.load %arg5[%c0_12, %c0_13] : memref<1x128xf32, #tpu.memory_space<vmem>>, vector<1x128xf32>
      %15 = vector.broadcast %14 : vector<1x128xf32> to vector<16x128xf32>
      %16 = arith.mulf %13, %15 : vector<16x128xf32>
      %c0_14 = arith.constant 0 : index
      %c0_15 = arith.constant 0 : index
      %17 = vector.load %arg6[%c0_14, %c0_15] : memref<16x128xf32, #tpu.memory_space<vmem>>, vector<16x128xf32>
      tpu.vector_store %arg6[%c0_14, %c0_15], %16 {strides = array<i32>} : memref<16x128xf32, #tpu.memory_space<vmem>>, vector<16x128xf32>,
    } else {
    }
    return
  }
  func.func @transform_0(%arg0: i32, %arg1: i32, %arg2: i32) -> (i32, i32) {
    %c0_i32 = arith.constant 0 : i32
    return %arg0, %arg2 : i32, i32
  }
  func.func @transform_1(%arg0: i32, %arg1: i32, %arg2: i32) -> (i32, i32) {
    %c0_i32 = arith.constant 0 : i32
    return %arg2, %arg1 : i32, i32
  }
  func.func @transform_2(%arg0: i32, %arg1: i32, %arg2: i32) -> (i32, i32) {
    %c0_i32 = arith.constant 0 : i32
    %c0_i32_0 = arith.constant 0 : i32
    return %c0_i32, %arg1 : i32, i32
  }
  func.func @transform_3(%arg0: i32, %arg1: i32, %arg2: i32) -> (i32, i32) {
    %c0_i32 = arith.constant 0 : i32
    return %arg0, %arg1 : i32, i32
  }
}

</mosaic_0001>

<llo_original>
// kernel: _quantized_matmul_2d.1
$region0: #{_quantized_matmul_2d.1}
  #allocation0 [shape = 'u32[]', space=smem, size = 0x4, offset = 0x4, fixed_abs, tag = 'smem constant byte address 0x4 - core index']
  #allocation1 [shape = 'u32[144,128]{1,0:T(1,128)}', space=vmem, size = 0x12000, scoped, tag = 'internal scratch']
  #allocation2 [shape = 'f32[16,128]{1,0:T(8,128)}', space=vmem, size = 0x2000, scoped, tag = 'scratch operand']
  %s0 = inlined_call_operand.hbm [shape: bf16[16,128], index: 0, kind: input, shape index: {}]
  %s1 = inlined_call_operand.hbm [shape: s8[128,128], index: 1, kind: input, shape index: {}]
  %s2 = inlined_call_operand.hbm [shape: f32[1,128], index: 2, kind: input, shape index: {}]
  %s3 = inlined_call_operand.hbm [shape: f32[16,128], index: 3, kind: output, shape index: {}]
  %s4 = sld [smem:[#allocation0]]
  $region42: #{_quantized_matmul_2d.1} parent=0
    _
  %s6 = ssub.s32 1, %s4
  %s7 = scalar_select 0, %s6, %s4
  $region1: #{_quantized_matmul_2d.1} parent=0
    #allocation3 [shape = 'u8[4096]{0}', space=vmem, size = 0x1000, scoped, tag = 'input window, operand 0, single buffered']
    #allocation4 [shape = 's32[1]{0}', space=sflag, size = 0x4, scoped, tag = 'scoped memory for _quantized_matmul_2d.1']
    #allocation5 [shape = 's32[1]{0}', space=sflag, size = 0x4, scoped, tag = 'scoped memory for _quantized_matmul_2d.1']
    #allocation6 [shape = 'u8[16384]{0}', space=vmem, size = 0x4000, scoped, tag = 'input window, operand 1, single buffered']
    #allocation7 [shape = 's32[1]{0}', space=sflag, size = 0x4, scoped, tag = 'scoped memory for _quantized_matmul_2d.1']
    #allocation8 [shape = 'u8[512]{0}', space=vmem, size = 0x400, scoped, tag = 'input window, operand 2, single buffered']
    #allocation9 [shape = 'u8[8192]{0}', space=vmem, size = 0x2000, scoped, tag = 'output window, operand 0, single buffered']
    %8 = vsyncpa [#allocation4], 0
    %9 = vsyncpa [#allocation7], 0
    %10 = vsyncpa [#allocation5], 0
    // Predicated region
    $region2: #{_quantized_matmul_2d.1} parent=1 // pred_check
      _
    $region3: #{_quantized_matmul_2d.1} parent=1 // pred_check_branch
      %12 = sbr.rel (0) target = $region5
    $region4: #{_quantized_matmul_2d.1} parent=1 // pred_region
      %s14 = ssub.s32 128, 128
      %15 = vsyncadd [#allocation4], %s14
      %s16 = sshll.u32 [#allocation3], 4
      %s17 = int_to_ptr.vmem [resolvable:$true] %s16
      %22 = dma.hbm_to_vmem [thread:$0]  %s0, 128, %s17, [#allocation4], 64, 64, 4
    $region5: #{_quantized_matmul_2d.1} parent=1 // pred_fallthru
      _
    // Predicated region
    $region6: #{_quantized_matmul_2d.1} parent=1 // pred_check
      _
    $region7: #{_quantized_matmul_2d.1} parent=1 // pred_check_branch
      %24 = sbr.rel (0) target = $region9
    $region8: #{_quantized_matmul_2d.1} parent=1 // pred_region
      %s26 = ssub.s32 512, 512
      %27 = vsyncadd [#allocation7], %s26
      %s28 = sshll.u32 [#allocation6], 4
      %s29 = int_to_ptr.vmem [resolvable:$true] %s28
      %34 = dma.hbm_to_vmem [thread:$0]  %s1, 512, %s29, [#allocation7], 128, 128, 8
    $region9: #{_quantized_matmul_2d.1} parent=1 // pred_fallthru
      _
    // Predicated region
    $region10: #{_quantized_matmul_2d.1} parent=1 // pred_check
      _
    $region11: #{_quantized_matmul_2d.1} parent=1 // pred_check_branch
      %36 = sbr.rel (0) target = $region13
    $region12: #{_quantized_matmul_2d.1} parent=1 // pred_region
      %s38 = ssub.s32 16, 16
      %39 = vsyncadd [#allocation7], %s38
      %s41 = sshll.u32 [#allocation8], 4
      %s42 = int_to_ptr.vmem [resolvable:$true] %s41
      %44 = dma.hbm_to_vmem [thread:$0]  %s2, 16, %s42, [#allocation7]
    $region13: #{_quantized_matmul_2d.1} parent=1 // pred_fallthru
      _
    // Predicated region
    $region14: #{_quantized_matmul_2d.1} parent=1 // pred_check
      _
    $region15: #{_quantized_matmul_2d.1} parent=1 // pred_check_branch
      %46 = sbr.rel (0) target = $region17
    $region16: #{_quantized_matmul_2d.1} parent=1 // pred_region
      %47 = dma.done [#allocation4], 128
    $region17: #{_quantized_matmul_2d.1} parent=1 // pred_fallthru
      _
    // Predicated region
    $region18: #{_quantized_matmul_2d.1} parent=1 // pred_check
      _
    $region19: #{_quantized_matmul_2d.1} parent=1 // pred_check_branch
      %49 = sbr.rel (0) target = $region21
    $region20: #{_quantized_matmul_2d.1} parent=1 // pred_region
      %50 = dma.done [#allocation7], 512
    $region21: #{_quantized_matmul_2d.1} parent=1 // pred_fallthru
      _
    // Predicated region
    $region22: #{_quantized_matmul_2d.1} parent=1 // pred_check
      _
    $region23: #{_quantized_matmul_2d.1} parent=1 // pred_check_branch
      %52 = sbr.rel (0) target = $region25
    $region24: #{_quantized_matmul_2d.1} parent=1 // pred_region
      %53 = dma.done [#allocation7], 16
    $region25: #{_quantized_matmul_2d.1} parent=1 // pred_fallthru
      _
    %p55 = scmp.eq.s32.totalorder 0, 0
    // Predicated region
    $region26: #{_quantized_matmul_2d.1} parent=1 // pred_check
      %p56 = pneg %p55
    $region27: #{_quantized_matmul_2d.1} parent=1 // pred_check_branch
      %58 = sbr.rel (%p56) target = $region29
    $region28: #{_quantized_matmul_2d.1} parent=1 // pred_region
      %59 = vst [vmem:[#allocation2] sm:$0xff] 0.0
      %60 = vst [vmem:[#allocation2 + $0x8] sm:$0xff] 0.0
    $region29: #{_quantized_matmul_2d.1} parent=1 // pred_fallthru
      _
    %v61 = vld [vmem:[#allocation3] sm:$0xf]
    %v62 = vld [vmem:[#allocation3 + $0x4] sm:$0xf]
    %v63 = vld [vmem:[#allocation6] sm:$0xff]
    %v64 = vld [vmem:[#allocation6 + $0x8] sm:$0xff]
    %v65 = vld [vmem:[#allocation6 + $0x10] sm:$0xff]
    %v66 = vld [vmem:[#allocation6 + $0x18] sm:$0xff]
    %v67 = vunpack.c.l.s8.bf16 %v63
    %v68 = vunpack.c.h.s8.bf16 %v63
    %v69 = vunpack.c.l.s8.bf16 %v64
    %v70 = vunpack.c.h.s8.bf16 %v64
    %v71 = vunpack.c.l.s8.bf16 %v65
    %v72 = vunpack.c.h.s8.bf16 %v65
    %v73 = vunpack.c.l.s8.bf16 %v66
    %v74 = vunpack.c.h.s8.bf16 %v66
    %v75 = vld [vmem:[#allocation2] sm:$0xff]
    %v76 = vld [vmem:[#allocation2 + $0x8] sm:$0xff]
    %v79 = vunpack.c.l.b16 %v61
    %v80 = vunpack.c.l.b16 %v62
    %v81 = vpack.c.b16 %v80, %v79
    %83 = vmatprep.subr.bf16.mxu0 0
    %84 = vmatpush1.bf16.msra.mxu0 %v67
    %85 = vmatprep.subr.bf16.mxu0 0
    %86 = vmatpush1.bf16.msra.mxu0 %v68
    %87 = vmatprep.subr.bf16.mxu0 0
    %88 = vmatpush1.bf16.msra.mxu0 %v69
    %89 = vmatprep.subr.bf16.mxu0 0
    %90 = vmatpush1.bf16.msra.mxu0 %v70
    %91 = vmatprep.subr.bf16.mxu0 0
    %92 = vmatpush1.bf16.msra.mxu0 %v71
    %93 = vmatprep.subr.bf16.mxu0 0
    %94 = vmatpush1.bf16.msra.mxu0 %v72
    %95 = vmatprep.subr.bf16.mxu0 0
    %96 = vmatpush1.bf16.msra.mxu0 %v73
    %97 = vmatprep.subr.bf16.mxu0 0
    %98 = vmatpush1.bf16.msra.mxu0 %v74
    %99 = vmatprep.subr.bf16.mxu0 0
    %100 = vmatpush1.bf16.msra.mxu0 0
    %101 = vmatprep.subr.bf16.mxu0 0
    %102 = vmatpush1.bf16.msra.mxu0 0
    %103 = vmatprep.subr.bf16.mxu0 0
    %104 = vmatpush1.bf16.msra.mxu0 0
    %105 = vmatprep.subr.bf16.mxu0 0
    %106 = vmatpush1.bf16.msra.mxu0 0
    %107 = vmatprep.subr.bf16.mxu0 0
    %108 = vmatpush1.bf16.msra.mxu0 0
    %109 = vmatprep.subr.bf16.mxu0 0
    %110 = vmatpush1.bf16.msra.mxu0 0
    %111 = vmatprep.subr.bf16.mxu0 0
    %112 = vmatpush1.bf16.msra.mxu0 0
    %113 = vmatprep.subr.bf16.mxu0 0
    %114 = vmatpush1.bf16.msra.mxu0 0
    %115 = vmatprep.mubr.bf16.mxu0 0
    %116 = vmatmul.mubr.bf16.gmra.mrb[0].mxu0 %v81
    %v117 = vpop.f32.mrb[0].mxu0
    %v118 = vadd.f32 0.0, %v117
    %v119 = vpop.f32.mrb[0].mxu0
    %v120 = vpop.f32.mrb[0].mxu0
    %v121 = vadd.f32 0.0, %v120
    %v122 = vpop.f32.mrb[0].mxu0
    %123 = vdwg.mxu0
    %v124 = vadd.f32 %v75, %v118
    %v125 = vadd.f32 %v76, %v121
    %126 = vst [vmem:[#allocation2] sm:$0xff] %v124
    %127 = vst [vmem:[#allocation2 + $0x8] sm:$0xff] %v125
    // Predicated region
    $region30: #{_quantized_matmul_2d.1} parent=1 // pred_check
      %p128 = pneg %p55
    $region31: #{_quantized_matmul_2d.1} parent=1 // pred_check_branch
      %130 = sbr.rel (%p128) target = $region33
    $region32: #{_quantized_matmul_2d.1} parent=1 // pred_region
      %v131 = vld [vmem:[#allocation2] sm:$0xff]
      %v132 = vld [vmem:[#allocation2 + $0x8] sm:$0xff]
      %v133 = vld [vmem:[#allocation8] sm:$0x1]
      %v135 = vlaneseq
      %v136 = vshrl.u32 %v135, 7
      %v137 = vsub.s32 0, %v136
      %v138 = vrot.slane %v133, %v137
      %v140 = vmul.f32 %v131, %v138
      %v141 = vmul.f32 %v132, %v138
      %142 = vst [vmem:[#allocation9] sm:$0xff] %v140
      %143 = vst [vmem:[#allocation9 + $0x8] sm:$0xff] %v141
    $region33: #{_quantized_matmul_2d.1} parent=1 // pred_fallthru
      _
    // Predicated region
    $region34: #{_quantized_matmul_2d.1} parent=1 // pred_check
      _
    $region35: #{_quantized_matmul_2d.1} parent=1 // pred_check_branch
      %145 = sbr.rel (0) target = $region37
    $region36: #{_quantized_matmul_2d.1} parent=1 // pred_region
      %s147 = ssub.s32 256, 256
      %148 = vsyncadd [#allocation5], %s147
      %s149 = sshll.u32 [#allocation9], 4
      %s150 = int_to_ptr.vmem [resolvable:$true] %s149
      %155 = dma.vmem_to_hbm [thread:$0]  %s150, 256, %s3, [#allocation5], 128, 128, 8
    $region37: #{_quantized_matmul_2d.1} parent=1 // pred_fallthru
      _
    // Predicated region
    $region38: #{_quantized_matmul_2d.1} parent=1 // pred_check
      _
    $region39: #{_quantized_matmul_2d.1} parent=1 // pred_check_branch
      %157 = sbr.rel (0) target = $region41
    $region40: #{_quantized_matmul_2d.1} parent=1 // pred_region
      %158 = dma.done [#allocation5], 256
    $region41: #{_quantized_matmul_2d.1} parent=1 // pred_fallthru
      _
    %159 = vsyncpa [#allocation4], 1
    %160 = vsyncpa [#allocation7], 1
    %161 = vsyncpa [#allocation5], 1

</llo_original>
